<compile_context>
chip_gen: v5e
topology: v5e:2x2
jax: 0.10.0
libtpu: 0.0.40
codegen_flags: <defaults>
</compile_context>

<pallas_src>
import jax
import jax.numpy as jnp
from jax import lax
from jax.experimental import pallas as pl
from jax.experimental.pallas import tpu as pltpu


def _contract_lanes(x, w):
    """Row-wise contraction of a 3-D tile with a 2-D matrix on the MXU.

    (TB, Tg, L) x (L, K) -> (TB, Tg, K) with no in-kernel reshape of the tile.
    """
    return lax.dot_general(
        x, w,
        dimension_numbers=(((x.ndim - 1,), (0,)), ((), ())),
        preferred_element_type=jnp.float32,
    )


def _question_attention_kernel(h_ref, mq_ref, wqT_bd_ref, bq_t_ref, wmT_ref,
                               bm_ref, wa_exp_ref, gsel_ref, gselT_ref, out_ref):
    # h_ref: (TB, Tg, FH) lane-packed hidden tile; lane l = g*H + j holds
    #        hidden[b, tg*F + g, j].   mq_ref: (TB, H).
    h = h_ref[...]                                  # native dtype straight to the MXU

    # tanh(Wq hidden + bq): block-diagonal Wq^T applies the HxH weight to every
    # lane group in one full-width MXU contraction.  f32 accumulate + f32 tanh.
    th = jnp.tanh(_contract_lanes(h, wqT_bd_ref[...]) + bq_t_ref[...])   # (TB,Tg,FH)

    # tanh(Wm m_q + bm), with wa folded into the (H -> FH) lane-expansion matmul.
    tm = jnp.tanh(
        jnp.dot(mq_ref[...], wmT_ref[...], preferred_element_type=jnp.float32)
        + bm_ref[...])                                                   # (TB, H)
    tm_wa = jnp.dot(tm, wa_exp_ref[...],
                    preferred_element_type=jnp.float32)                  # (TB, FH)

    # Per-position attention scores: elementwise product, then contract each
    # H-lane group on the MXU.  (w_attention bias is a constant shift along the
    # softmax axis -> dropped; it cancels exactly.)
    prod = th * tm_wa[:, None, :]                                        # (TB,Tg,FH)
    scores = _contract_lanes(prod, gsel_ref[...])                        # (TB,Tg,F)

    # Numerically stable softmax over the sequence axis = joint (Tg, F) axes.
    m = jnp.max(jnp.max(scores, axis=2, keepdims=True), axis=1, keepdims=True)
    e = jnp.exp(scores - m)
    denom = jnp.sum(jnp.sum(e, axis=2, keepdims=True), axis=1, keepdims=True)
    alpha = e / denom                                                    # (TB,Tg,F)

    # Broadcast alpha back to the packed lane layout on the MXU, weight the
    # hidden tile, and reduce over the folded sequence axis (sublanes).
    alpha_l = _contract_lanes(alpha, gselT_ref[...])                     # (TB,Tg,FH)
    out_ref[...] = jnp.sum(alpha_l * h.astype(jnp.float32),
                           axis=1).astype(out_ref.dtype)                 # (TB, FH)


def _fold_factor(T, H, max_lanes=128):
    """Number of sequence steps folded into the lane axis (must divide T)."""
    f = max(1, max_lanes // max(H, 1))
    while f > 1 and T % f:
        f -= 1
    return f


def _pick_batch_tile(B, row_bytes, target_bytes=4 << 20):
    """Batch rows per grid step.

    ~4 MiB streamed tiles (near the HBM-roofline knee, amortizes the ~0.35 us
    per-step pipeline overhead), kept a multiple of 8 when not covering the whole
    batch, and capped so the grid has >= 2 steps when possible so v7x's two
    TensorCores (grid axis marked "parallel") both get work.
    """
    if B <= 8:
        return int(B)
    tb = min(B, max(8, (target_bytes // max(row_bytes, 1)) // 8 * 8))
    if tb >= B:  # prefer two grid steps over one huge one
        tb = max(8, ((B + 1) // 2 + 7) // 8 * 8)
    return int(B if tb >= B else tb)


def question_attention(hidden_list, m_q, wq, bq, wm, bm, wa, ba):
    """Pallas implementation of QuestionAttention.forward.

    Args:
      hidden_list: (B, T, H)
      m_q:         (B, H)
      wq, wm:      (H, H)  torch nn.Linear weight layout (out_features, in_features)
      bq, bm:      (H,)
      wa:          (1, H)  w_attention weight
      ba:          (1,)    w_attention bias (cancels exactly in the softmax)
    Returns:
      (output, m_q_new), each (B, H) float32.
    """
    B, T, H = hidden_list.shape
    assert m_q.shape == (B, H), (m_q.shape, (B, H))
    f32 = jnp.float32

    F = _fold_factor(T, H)
    Tg, FH = T // F, F * H

    # Lane-packed view of the streamed tensor (free row-major reshape in XLA).
    h_folded = hidden_list.reshape(B, Tg, FH)

    # Parameters, staged once and VMEM-resident across grid steps (index_map (0,0)).
    # Matmul weights are cast to the activation dtype so bf16 inputs use the MXU's
    # native bf16 path; biases / structured matrices stay f32 (post-MXU math is f32).
    wqT_bd = jnp.kron(jnp.eye(F, dtype=f32),
                      jnp.transpose(wq).astype(f32)).astype(hidden_list.dtype)  # (FH,FH)
    bq_t = jnp.tile(jnp.reshape(bq, (1, H)).astype(f32), (1, F))                # (1, FH)
    wmT = jnp.transpose(wm).astype(m_q.dtype)                                   # (H, H)
    bm2 = jnp.reshape(bm, (1, H)).astype(f32)                                   # (1, H)
    wa_exp = jnp.kron(jnp.ones((1, F), dtype=f32),
                      jnp.diag(jnp.reshape(wa, (H,)).astype(f32)))              # (H, FH)
    gsel = jnp.kron(jnp.eye(F, dtype=f32), jnp.ones((H, 1), dtype=f32))         # (FH, F)
    gselT = jnp.transpose(gsel)                                                 # (F, FH)
    del ba  # constant shift along the softmax axis: softmax(x + c) == softmax(x)

    itemsize = jnp.dtype(hidden_list.dtype).itemsize
    TB = _pick_batch_tile(B, Tg * FH * itemsize)
    grid = (pl.cdiv(B, TB),)

    out_packed = pl.pallas_call(
        _question_attention_kernel,
        out_shape=jax.ShapeDtypeStruct((B, FH), f32),
        grid_spec=pltpu.PrefetchScalarGridSpec(
            num_scalar_prefetch=0,
            grid=grid,
            in_specs=[
                pl.BlockSpec((TB, Tg, FH), lambda b: (b, 0, 0)),   # hidden (streamed)
                pl.BlockSpec((TB, H), lambda b: (b, 0)),           # m_q tile
                pl.BlockSpec((FH, FH), lambda b: (0, 0)),          # block-diag Wq^T
                pl.BlockSpec((1, FH), lambda b: (0, 0)),           # tiled b_q
                pl.BlockSpec((H, H), lambda b: (0, 0)),            # Wm^T
                pl.BlockSpec((1, H), lambda b: (0, 0)),            # b_m
                pl.BlockSpec((H, FH), lambda b: (0, 0)),           # wa ⊗ lane-expand
                pl.BlockSpec((FH, F), lambda b: (0, 0)),           # group reduce
                pl.BlockSpec((F, FH), lambda b: (0, 0)),           # group expand
            ],
            out_specs=pl.BlockSpec((TB, FH), lambda b: (b, 0)),    # lane-dense output
        ),
        compiler_params=pltpu.CompilerParams(
            dimension_semantics=("parallel",),
            vmem_limit_bytes=40 * 1024 * 1024,
        ),
    )(h_folded, m_q, wqT_bd, bq_t, wmT, bm2, wa_exp, gsel, gselT)

    # Un-fold the lane groups and form m_q' outside the kernel (tiny XLA ops),
    # halving the kernel's store traffic.
    out = jnp.sum(out_packed.reshape(B, F, H), axis=1)
    m_q_new = m_q.astype(f32) + out
    return out, m_q_new


def _reference(hidden, m_q, wq, bq, wm, bm, wa, ba):
    th = jnp.tanh(hidden @ wq.T + bq)
    tm = jnp.tanh(m_q @ wm.T + bm)
    S = th * tm[:, None, :]
    scores = S @ wa.T + ba                         # (B, T, 1)
    alpha = jax.nn.softmax(scores, axis=-2)
    out = jnp.sum(alpha * hidden, axis=-2)
    return out, m_q + out


if __name__ == "__main__":
    key = jax.random.PRNGKey(0)
    ks = jax.random.split(key, 8)

    # args.bidire_layer = 2, args.lstm_hidden_size = 16 -> H = 32
    bidire_layer, lstm_hidden_size = 2, 16
    H = bidire_layer * lstm_hidden_size
    B, T = 2, 8

    hidden = jax.random.normal(ks[0], (B, T, H), dtype=jnp.float32)
    m_q = jax.random.normal(ks[1], (B, H), dtype=jnp.float32)

    scale = 1.0 / (H ** 0.5)
    wq = jax.random.uniform(ks[2], (H, H), minval=-scale, maxval=scale, dtype=jnp.float32)
    bq = jax.random.uniform(ks[3], (H,), minval=-scale, maxval=scale, dtype=jnp.float32)
    wm = jax.random.uniform(ks[4], (H, H), minval=-scale, maxval=scale, dtype=jnp.float32)
    bm = jax.random.uniform(ks[5], (H,), minval=-scale, maxval=scale, dtype=jnp.float32)
    wa = jax.random.uniform(ks[6], (1, H), minval=-scale, maxval=scale, dtype=jnp.float32)
    ba = jax.random.uniform(ks[7], (1,), minval=-scale, maxval=scale, dtype=jnp.float32)

    out, mq_new = question_attention(hidden, m_q, wq, bq, wm, bm, wa, ba)
    out = jax.block_until_ready(out)
    mq_new = jax.block_until_ready(mq_new)

    ref_out, ref_mq = _reference(hidden, m_q, wq, bq, wm, bm, wa, ba)
    assert out.shape == (B, H) and mq_new.shape == (B, H)
    assert jnp.allclose(out, ref_out, atol=1e-5, rtol=1e-5), (out, ref_out)
    assert jnp.allclose(mq_new, ref_mq, atol=1e-5, rtol=1e-5), (mq_new, ref_mq)

    print("KERNEL_OK")
</pallas_src>

<mosaic_0001>
module attributes {stable_mosaic.version = 11 : i64} {
  func.func @_question_attention_kernel(%arg0: i32, %arg1: memref<2x2x128xf32, #tpu.memory_space<vmem>>, %arg2: memref<2x32xf32, #tpu.memory_space<vmem>>, %arg3: memref<128x128xf32, #tpu.memory_space<vmem>>, %arg4: memref<1x128xf32, #tpu.memory_space<vmem>>, %arg5: memref<32x32xf32, #tpu.memory_space<vmem>>, %arg6: memref<1x32xf32, #tpu.memory_space<vmem>>, %arg7: memref<32x128xf32, #tpu.memory_space<vmem>>, %arg8: memref<128x4xf32, #tpu.memory_space<vmem>>, %arg9: memref<4x128xf32, #tpu.memory_space<vmem>>, %arg10: memref<2x128xf32, #tpu.memory_space<vmem>>) attributes {dimension_semantics = [#tpu.dimension_semantics<parallel>], iteration_bounds = array<i64: 1>, scalar_prefetch = 0 : i64, scratch_operands = 0 : i64, tpu.core_type = #tpu.core_type<tc>, window_params = [{transform_indices = @transform_0, window_bounds = array<i64: 2, 2, 128>}, {transform_indices = @transform_1, window_bounds = array<i64: 2, 32>}, {pipeline_mode = #tpu.pipeline_mode<synchronous>, transform_indices = @transform_2, window_bounds = array<i64: 128, 128>}, {pipeline_mode = #tpu.pipeline_mode<synchronous>, transform_indices = @transform_3, window_bounds = array<i64: 1, 128>}, {pipeline_mode = #tpu.pipeline_mode<synchronous>, transform_indices = @transform_4, window_bounds = array<i64: 32, 32>}, {pipeline_mode = #tpu.pipeline_mode<synchronous>, transform_indices = @transform_5, window_bounds = array<i64: 1, 32>}, {pipeline_mode = #tpu.pipeline_mode<synchronous>, transform_indices = @transform_6, window_bounds = array<i64: 32, 128>}, {pipeline_mode = #tpu.pipeline_mode<synchronous>, transform_indices = @transform_7, window_bounds = array<i64: 128, 4>}, {pipeline_mode = #tpu.pipeline_mode<synchronous>, transform_indices = @transform_8, window_bounds = array<i64: 4, 128>}, {transform_indices = @transform_9, window_bounds = array<i64: 2, 128>}]} {
    %c0 = arith.constant 0 : index
    %c0_0 = arith.constant 0 : index
    %c0_1 = arith.constant 0 : index
    %0 = vector.load %arg1[%c0, %c0_0, %c0_1] : memref<2x2x128xf32, #tpu.memory_space<vmem>>, vector<2x2x128xf32>
    %c0_2 = arith.constant 0 : index
    %c0_3 = arith.constant 0 : index
    %1 = vector.load %arg3[%c0_2, %c0_3] : memref<128x128xf32, #tpu.memory_space<vmem>>, vector<128x128xf32>
    %cst = arith.constant dense<0.000000e+00> : vector<2x2x128xf32>
    %2 = tpu.matmul %0, %1, %cst {dimension_numbers = #tpu.dot_dimension_numbers<[2], [0], [0, 1], [1], [0, 0, 0, 1, 1, 1], [], []>} : vector<2x2x128xf32>, vector<128x128xf32>, vector<2x2x128xf32> -> vector<2x2x128xf32>
    %c0_4 = arith.constant 0 : index
    %c0_5 = arith.constant 0 : index
    %3 = vector.load %arg4[%c0_4, %c0_5] : memref<1x128xf32, #tpu.memory_space<vmem>>, vector<1x128xf32>
    %4 = vector.shape_cast %3 : vector<1x128xf32> to vector<1x1x128xf32>
    %5 = vector.broadcast %4 : vector<1x1x128xf32> to vector<2x2x128xf32>
    %6 = arith.addf %2, %5 : vector<2x2x128xf32>
    %7 = math.tanh %6 : vector<2x2x128xf32>
    %c0_6 = arith.constant 0 : index
    %c0_7 = arith.constant 0 : index
    %8 = vector.load %arg2[%c0_6, %c0_7] : memref<2x32xf32, #tpu.memory_space<vmem>>, vector<2x32xf32>
    %c0_8 = arith.constant 0 : index
    %c0_9 = arith.constant 0 : index
    %9 = vector.load %arg5[%c0_8, %c0_9] : memref<32x32xf32, #tpu.memory_space<vmem>>, vector<32x32xf32>
    %cst_10 = arith.constant dense<0.000000e+00> : vector<2x32xf32>
    %10 = tpu.matmul %8, %9, %cst_10 {dimension_numbers = #tpu.dot_dimension_numbers<[1], [0], [0], [1], [0, 0, 1, 1], [], []>} : vector<2x32xf32>, vector<32x32xf32>, vector<2x32xf32> -> vector<2x32xf32>
    %c0_11 = arith.constant 0 : index
    %c0_12 = arith.constant 0 : index
    %11 = vector.load %arg6[%c0_11, %c0_12] : memref<1x32xf32, #tpu.memory_space<vmem>>, vector<1x32xf32>
    %12 = vector.broadcast %11 : vector<1x32xf32> to vector<2x32xf32>
    %13 = arith.addf %10, %12 : vector<2x32xf32>
    %14 = math.tanh %13 : vector<2x32xf32>
    %c0_13 = arith.constant 0 : index
    %c0_14 = arith.constant 0 : index
    %15 = vector.load %arg7[%c0_13, %c0_14] : memref<32x128xf32, #tpu.memory_space<vmem>>, vector<32x128xf32>
    %cst_15 = arith.constant dense<0.000000e+00> : vector<2x128xf32>
    %16 = tpu.matmul %14, %15, %cst_15 {dimension_numbers = #tpu.dot_dimension_numbers<[1], [0], [0], [1], [0, 0, 1, 1], [], []>} : vector<2x32xf32>, vector<32x128xf32>, vector<2x128xf32> -> vector<2x128xf32>
    %17 = vector.shape_cast %16 : vector<2x128xf32> to vector<2x1x128xf32>
    %18 = vector.broadcast %17 : vector<2x1x128xf32> to vector<2x2x128xf32>
    %19 = arith.mulf %7, %18 : vector<2x2x128xf32>
    %c0_16 = arith.constant 0 : index
    %c0_17 = arith.constant 0 : index
    %20 = vector.load %arg8[%c0_16, %c0_17] : memref<128x4xf32, #tpu.memory_space<vmem>>, vector<128x4xf32>
    %cst_18 = arith.constant dense<0.000000e+00> : vector<2x2x4xf32>
    %21 = tpu.matmul %19, %20, %cst_18 {dimension_numbers = #tpu.dot_dimension_numbers<[2], [0], [0, 1], [1], [0, 0, 0, 1, 1, 1], [], []>} : vector<2x2x128xf32>, vector<128x4xf32>, vector<2x2x4xf32> -> vector<2x2x4xf32>
    %cst_19 = arith.constant dense<0xFF800000> : vector<2x2xf32>
    %22 = vector.multi_reduction <maximumf>, %21, %cst_19 [2] : vector<2x2x4xf32> to vector<2x2xf32>
    %23 = vector.shape_cast %22 : vector<2x2xf32> to vector<2x2x1xf32>
    %cst_20 = arith.constant dense<0xFF800000> : vector<2x1xf32>
    %24 = vector.multi_reduction <maximumf>, %23, %cst_20 [1] : vector<2x2x1xf32> to vector<2x1xf32>
    %25 = vector.shape_cast %24 : vector<2x1xf32> to vector<2x1x1xf32>
    %26 = vector.broadcast %25 : vector<2x1x1xf32> to vector<2x2x4xf32>
    %27 = arith.subf %21, %26 : vector<2x2x4xf32>
    %28 = math.exp %27 : vector<2x2x4xf32>
    %cst_21 = arith.constant dense<0.000000e+00> : vector<2x2xf32>
    %29 = vector.multi_reduction <add>, %28, %cst_21 [2] : vector<2x2x4xf32> to vector<2x2xf32>
    %30 = vector.shape_cast %29 : vector<2x2xf32> to vector<2x2x1xf32>
    %cst_22 = arith.constant dense<0.000000e+00> : vector<2x1xf32>
    %31 = vector.multi_reduction <add>, %30, %cst_22 [1] : vector<2x2x1xf32> to vector<2x1xf32>
    %32 = vector.shape_cast %31 : vector<2x1xf32> to vector<2x1x1xf32>
    %33 = vector.broadcast %32 : vector<2x1x1xf32> to vector<2x2x4xf32>
    %34 = arith.divf %28, %33 : vector<2x2x4xf32>
    %c0_23 = arith.constant 0 : index
    %c0_24 = arith.constant 0 : index
    %35 = vector.load %arg9[%c0_23, %c0_24] : memref<4x128xf32, #tpu.memory_space<vmem>>, vector<4x128xf32>
    %cst_25 = arith.constant dense<0.000000e+00> : vector<2x2x128xf32>
    %36 = tpu.matmul %34, %35, %cst_25 {dimension_numbers = #tpu.dot_dimension_numbers<[2], [0], [0, 1], [1], [0, 0, 0, 1, 1, 1], [], []>} : vector<2x2x4xf32>, vector<4x128xf32>, vector<2x2x128xf32> -> vector<2x2x128xf32>
    %37 = arith.mulf %36, %0 : vector<2x2x128xf32>
    %cst_26 = arith.constant dense<0.000000e+00> : vector<2x128xf32>
    %38 = vector.multi_reduction <add>, %37, %cst_26 [1] : vector<2x2x128xf32> to vector<2x128xf32>
    %c0_27 = arith.constant 0 : index
    %c0_28 = arith.constant 0 : index
    %39 = vector.load %arg10[%c0_27, %c0_28] : memref<2x128xf32, #tpu.memory_space<vmem>>, vector<2x128xf32>
    tpu.vector_store %arg10[%c0_27, %c0_28], %38 {strides = array<i32>} : memref<2x128xf32, #tpu.memory_space<vmem>>, vector<2x128xf32>,
    return
  }
  func.func @transform_0(%arg0: i32) -> (i32, i32, i32) {
    %c0_i32 = arith.constant 0 : i32
    %c0_i32_0 = arith.constant 0 : i32
    %c0_i32_1 = arith.constant 0 : i32
    return %arg0, %c0_i32, %c0_i32_0 : i32, i32, i32
  }
  func.func @transform_1(%arg0: i32) -> (i32, i32) {
    %c0_i32 = arith.constant 0 : i32
    %c0_i32_0 = arith.constant 0 : i32
    return %arg0, %c0_i32 : i32, i32
  }
  func.func @transform_2(%arg0: i32) -> (i32, i32) {
    %c0_i32 = arith.constant 0 : i32
    %c0_i32_0 = arith.constant 0 : i32
    %c0_i32_1 = arith.constant 0 : i32
    return %c0_i32, %c0_i32_0 : i32, i32
  }
  func.func @transform_3(%arg0: i32) -> (i32, i32) {
    %c0_i32 = arith.constant 0 : i32
    %c0_i32_0 = arith.constant 0 : i32
    %c0_i32_1 = arith.constant 0 : i32
    return %c0_i32, %c0_i32_0 : i32, i32
  }
  func.func @transform_4(%arg0: i32) -> (i32, i32) {
    %c0_i32 = arith.constant 0 : i32
    %c0_i32_0 = arith.constant 0 : i32
    %c0_i32_1 = arith.constant 0 : i32
    return %c0_i32, %c0_i32_0 : i32, i32
  }
  func.func @transform_5(%arg0: i32) -> (i32, i32) {
    %c0_i32 = arith.constant 0 : i32
    %c0_i32_0 = arith.constant 0 : i32
    %c0_i32_1 = arith.constant 0 : i32
    return %c0_i32, %c0_i32_0 : i32, i32
  }
  func.func @transform_6(%arg0: i32) -> (i32, i32) {
    %c0_i32 = arith.constant 0 : i32
    %c0_i32_0 = arith.constant 0 : i32
    %c0_i32_1 = arith.constant 0 : i32
    return %c0_i32, %c0_i32_0 : i32, i32
  }
  func.func @transform_7(%arg0: i32) -> (i32, i32) {
    %c0_i32 = arith.constant 0 : i32
    %c0_i32_0 = arith.constant 0 : i32
    %c0_i32_1 = arith.constant 0 : i32
    return %c0_i32, %c0_i32_0 : i32, i32
  }
  func.func @transform_8(%arg0: i32) -> (i32, i32) {
    %c0_i32 = arith.constant 0 : i32
    %c0_i32_0 = arith.constant 0 : i32
    %c0_i32_1 = arith.constant 0 : i32
    return %c0_i32, %c0_i32_0 : i32, i32
  }
  func.func @transform_9(%arg0: i32) -> (i32, i32) {
    %c0_i32 = arith.constant 0 : i32
    %c0_i32_0 = arith.constant 0 : i32
    return %arg0, %c0_i32 : i32, i32
  }
}

</mosaic_0001>

<llo_original>
// kernel: tpu_custom_call.1
$region0: #{tpu_custom_call.1}
  #allocation0 [shape = 'u32[]', space=smem, size = 0x4, offset = 0x4, fixed_abs, tag = 'smem constant byte address 0x4 - core index']
  #allocation1 [shape = 'u32[72,128]{1,0:T(1,128)}', space=vmem, size = 0x9000, scoped, tag = 'internal scratch']
  %s0 = inlined_call_operand.vmem [shape: f32[2,2,128], index: 0, kind: input, shape index: {}]
  %s1 = inlined_call_operand.hbm [shape: f32[2,32], index: 1, kind: input, shape index: {}]
  %s2 = inlined_call_operand.vmem [shape: f32[128,128], index: 2, kind: input, shape index: {}]
  %s3 = inlined_call_operand.vmem [shape: f32[1,128], index: 3, kind: input, shape index: {}]
  %s4 = inlined_call_operand.hbm [shape: f32[32,32], index: 4, kind: input, shape index: {}]
  %s5 = inlined_call_operand.vmem [shape: f32[1,32], index: 5, kind: input, shape index: {}]
  %s6 = inlined_call_operand.hbm [shape: f32[32,128], index: 6, kind: input, shape index: {}]
  %s7 = inlined_call_operand.vmem [shape: f32[128,4], index: 7, kind: input, shape index: {}]
  %s8 = inlined_call_operand.hbm [shape: f32[4,128], index: 8, kind: input, shape index: {}]
  %s9 = inlined_call_operand.hbm [shape: f32[2,128], index: 9, kind: output, shape index: {}]
  %s10 = sld [smem:[#allocation0]]
  $region62: #{tpu_custom_call.1} parent=0
    _
  %s12 = ssub.s32 1, %s10
  %s13 = scalar_select 0, %s12, %s10
  $region1: #{tpu_custom_call.1} parent=0
    #allocation2 [shape = 'u8[1024]{0}', space=vmem, size = 0x400, scoped, tag = 'input window, operand 1, single buffered']
    #allocation3 [shape = 's32[1]{0}', space=sflag, size = 0x4, scoped, tag = 'scoped memory for tpu_custom_call.1']
    #allocation4 [shape = 's32[1]{0}', space=sflag, size = 0x4, scoped, tag = 'scoped memory for tpu_custom_call.1']
    #allocation5 [shape = 'u8[16384]{0}', space=vmem, size = 0x4000, scoped, tag = 'input window, operand 4, single buffered']
    #allocation6 [shape = 's32[1]{0}', space=sflag, size = 0x4, scoped, tag = 'scoped memory for tpu_custom_call.1']
    #allocation7 [shape = 'u8[16384]{0}', space=vmem, size = 0x4000, scoped, tag = 'input window, operand 6, single buffered']
    #allocation8 [shape = 'u8[2048]{0}', space=vmem, size = 0x800, scoped, tag = 'input window, operand 8, single buffered']
    #allocation9 [shape = 's32[1]{0}', space=sflag, size = 0x4, scoped, tag = 'scoped memory for tpu_custom_call.1']
    #allocation10 [shape = 'u8[1024]{0}', space=vmem, size = 0x400, scoped, tag = 'output window, operand 0, single buffered']
    %14 = vsyncpa [#allocation3], 0
    %15 = vsyncpa [#allocation6], 0
    %16 = vsyncpa [#allocation9], 0
    %17 = vsyncpa [#allocation4], 0
    // Predicated region
    $region2: #{tpu_custom_call.1} parent=1 // pred_check
      _
    $region3: #{tpu_custom_call.1} parent=1 // pred_check_branch
      %19 = sbr.rel (0) target = $region5
    $region4: #{tpu_custom_call.1} parent=1 // pred_region
      _
    $region5: #{tpu_custom_call.1} parent=1 // pred_fallthru
      _
    // Predicated region
    $region6: #{tpu_custom_call.1} parent=1 // pred_check
      _
    $region7: #{tpu_custom_call.1} parent=1 // pred_check_branch
      %21 = sbr.rel (0) target = $region9
    $region8: #{tpu_custom_call.1} parent=1 // pred_region
      %23 = vsyncadd [#allocation3], 0
      %s25 = sshll.u32 %s1, 4
      %s26 = int_to_ptr.hbm [resolvable:$true] %s25
      %s27 = sshll.u32 [#allocation2], 4
      %s28 = int_to_ptr.vmem [resolvable:$true] %s27
      %30 = dma.hbm_to_vmem [thread:$0]  %s26, 32, %s28, [#allocation3]
    $region9: #{tpu_custom_call.1} parent=1 // pred_fallthru
      _
    // Predicated region
    $region10: #{tpu_custom_call.1} parent=1 // pred_check
      _
    $region11: #{tpu_custom_call.1} parent=1 // pred_check_branch
      %32 = sbr.rel (0) target = $region13
    $region12: #{tpu_custom_call.1} parent=1 // pred_region
      _
    $region13: #{tpu_custom_call.1} parent=1 // pred_fallthru
      _
    // Predicated region
    $region14: #{tpu_custom_call.1} parent=1 // pred_check
      _
    $region15: #{tpu_custom_call.1} parent=1 // pred_check_branch
      %34 = sbr.rel (0) target = $region17
    $region16: #{tpu_custom_call.1} parent=1 // pred_region
      _
    $region17: #{tpu_custom_call.1} parent=1 // pred_fallthru
      _
    // Predicated region
    $region18: #{tpu_custom_call.1} parent=1 // pred_check
      _
    $region19: #{tpu_custom_call.1} parent=1 // pred_check_branch
      %36 = sbr.rel (0) target = $region21
    $region20: #{tpu_custom_call.1} parent=1 // pred_region
      %38 = vsyncadd [#allocation6], 0
      %s39 = sshll.u32 %s4, 4
      %s40 = int_to_ptr.hbm [resolvable:$true] %s39
      %s41 = sshll.u32 [#allocation5], 4
      %s42 = int_to_ptr.vmem [resolvable:$true] %s41
      %47 = dma.hbm_to_vmem [thread:$0]  %s40, 512, %s42, [#allocation6], 128, 128, 8
    $region21: #{tpu_custom_call.1} parent=1 // pred_fallthru
      _
    // Predicated region
    $region22: #{tpu_custom_call.1} parent=1 // pred_check
      _
    $region23: #{tpu_custom_call.1} parent=1 // pred_check_branch
      %49 = sbr.rel (0) target = $region25
    $region24: #{tpu_custom_call.1} parent=1 // pred_region
      _
    $region25: #{tpu_custom_call.1} parent=1 // pred_fallthru
      _
    // Predicated region
    $region26: #{tpu_custom_call.1} parent=1 // pred_check
      _
    $region27: #{tpu_custom_call.1} parent=1 // pred_check_branch
      %51 = sbr.rel (0) target = $region29
    $region28: #{tpu_custom_call.1} parent=1 // pred_region
      %53 = vsyncadd [#allocation6], 0
      %s54 = sshll.u32 %s6, 4
      %s55 = int_to_ptr.hbm [resolvable:$true] %s54
      %s56 = sshll.u32 [#allocation7], 4
      %s57 = int_to_ptr.vmem [resolvable:$true] %s56
      %62 = dma.hbm_to_vmem [thread:$0]  %s55, 512, %s57, [#allocation6], 128, 128, 8
    $region29: #{tpu_custom_call.1} parent=1 // pred_fallthru
      _
    // Predicated region
    $region30: #{tpu_custom_call.1} parent=1 // pred_check
      _
    $region31: #{tpu_custom_call.1} parent=1 // pred_check_branch
      %64 = sbr.rel (0) target = $region33
    $region32: #{tpu_custom_call.1} parent=1 // pred_region
      _
    $region33: #{tpu_custom_call.1} parent=1 // pred_fallthru
      _
    // Predicated region
    $region34: #{tpu_custom_call.1} parent=1 // pred_check
      _
    $region35: #{tpu_custom_call.1} parent=1 // pred_check_branch
      %66 = sbr.rel (0) target = $region37
    $region36: #{tpu_custom_call.1} parent=1 // pred_region
      %68 = vsyncadd [#allocation9], 0
      %s70 = sshll.u32 %s8, 4
      %s71 = int_to_ptr.hbm [resolvable:$true] %s70
      %s72 = sshll.u32 [#allocation8], 4
      %s73 = int_to_ptr.vmem [resolvable:$true] %s72
      %75 = dma.hbm_to_vmem [thread:$0]  %s71, 64, %s73, [#allocation9]
    $region37: #{tpu_custom_call.1} parent=1 // pred_fallthru
      _
    // Predicated region
    $region38: #{tpu_custom_call.1} parent=1 // pred_check
      _
    $region39: #{tpu_custom_call.1} parent=1 // pred_check_branch
      %77 = sbr.rel (0) target = $region41
    $region40: #{tpu_custom_call.1} parent=1 // pred_region
      %79 = dma.done [#allocation3], 32
    $region41: #{tpu_custom_call.1} parent=1 // pred_fallthru
      _
    // Predicated region
    $region42: #{tpu_custom_call.1} parent=1 // pred_check
      _
    $region43: #{tpu_custom_call.1} parent=1 // pred_check_branch
      %81 = sbr.rel (0) target = $region45
    $region44: #{tpu_custom_call.1} parent=1 // pred_region
      %83 = dma.done [#allocation6], 512
    $region45: #{tpu_custom_call.1} parent=1 // pred_fallthru
      _
    // Predicated region
    $region46: #{tpu_custom_call.1} parent=1 // pred_check
      _
    $region47: #{tpu_custom_call.1} parent=1 // pred_check_branch
      %85 = sbr.rel (0) target = $region49
    $region48: #{tpu_custom_call.1} parent=1 // pred_region
      %87 = dma.done [#allocation6], 512
    $region49: #{tpu_custom_call.1} parent=1 // pred_fallthru
      _
    // Predicated region
    $region50: #{tpu_custom_call.1} parent=1 // pred_check
      _
    $region51: #{tpu_custom_call.1} parent=1 // pred_check_branch
      %89 = sbr.rel (0) target = $region53
    $region52: #{tpu_custom_call.1} parent=1 // pred_region
      %91 = dma.done [#allocation9], 64
    $region53: #{tpu_custom_call.1} parent=1 // pred_fallthru
      _
    %v92 = vld [vmem:[%s0] sm:$0x3]
    %v93 = vld [vmem:[%s0 + $0x2] sm:$0x3]
    %v94 = vld [vmem:[%s2] sm:$0xff]
    %v95 = vld [vmem:[%s2 + $0x8] sm:$0xff]
    %v96 = vld [vmem:[%s2 + $0x10] sm:$0xff]
    %v97 = vld [vmem:[%s2 + $0x18] sm:$0xff]
    %v98 = vld [vmem:[%s2 + $0x20] sm:$0xff]
    %v99 = vld [vmem:[%s2 + $0x28] sm:$0xff]
    %v100 = vld [vmem:[%s2 + $0x30] sm:$0xff]
    %v101 = vld [vmem:[%s2 + $0x38] sm:$0xff]
    %v102 = vld [vmem:[%s2 + $0x40] sm:$0xff]
    %v103 = vld [vmem:[%s2 + $0x48] sm:$0xff]
    %v104 = vld [vmem:[%s2 + $0x50] sm:$0xff]
    %v105 = vld [vmem:[%s2 + $0x58] sm:$0xff]
    %v106 = vld [vmem:[%s2 + $0x60] sm:$0xff]
    %v107 = vld [vmem:[%s2 + $0x68] sm:$0xff]
    %v108 = vld [vmem:[%s2 + $0x70] sm:$0xff]
    %v109 = vld [vmem:[%s2 + $0x78] sm:$0xff]
    %v110 = vld [vmem:[%s3] sm:$0x1]
    %v112 = vperm.slane %v110, 0
    %115 = vst [vmem:[#allocation1] ss:$4 sm:$0xff] %v92
    %s116 = scalar_lea.vmem [#allocation1], 1
    %117 = vst [vmem:[%s116] ss:$4 sm:$0xff] %v93
    %v118 = vld.sshfl [vmem:[#allocation1] sm:$0xff pattern:$0x73625140]
    %120 = vst [vmem:[#allocation1] ss:$4 sm:$0xff] %v112
    %s121 = scalar_lea.vmem [#allocation1], 1
    %122 = vst [vmem:[%s121] ss:$4 sm:$0xff] %v112
    %v123 = vld.sshfl [vmem:[#allocation1] sm:$0xff pattern:$0x73625140]
    %125 = vmatpush.msra.mxu0 %v109
    %126 = vmatpush.msra.mxu0 %v108
    %127 = vmatpush.msra.mxu0 %v107
    %128 = vmatpush.msra.mxu0 %v106
    %129 = vmatpush.msra.mxu0 %v105
    %130 = vmatpush.msra.mxu0 %v104
    %131 = vmatpush.msra.mxu0 %v103
    %132 = vmatpush.msra.mxu0 %v102
    %133 = vmatpush.msra.mxu0 %v101
    %134 = vmatpush.msra.mxu0 %v100
    %135 = vmatpush.msra.mxu0 %v99
    %136 = vmatpush.msra.mxu0 %v98
    %137 = vmatpush.msra.mxu0 %v97
    %138 = vmatpush.msra.mxu0 %v96
    %139 = vmatpush.msra.mxu0 %v95
    %140 = vmatpush.msra.mxu0 %v94
    %141 = vmatmul.f32.gmra.mxu0 %v118
    %v142 = vpop.f32.mrf.mxu0
    %v143 = vadd.f32 %v123, %v142
    %144 = vdwg.mxu0
    %v146 = vrot.slane %v143, 2
    %v148 = vtanh.pop %v143
    %v149 = vtanh.pop %v146
    %v150 = vld [vmem:[#allocation2] sm:$0x3]
    %v151 = vld [vmem:[#allocation5] sm:$0xff]
    %v152 = vld [vmem:[#allocation5 + $0x8] sm:$0xff]
    %v153 = vld [vmem:[#allocation5 + $0x10] sm:$0xff]
    %v154 = vld [vmem:[#allocation5 + $0x18] sm:$0xff]
    %v155 = vld [vmem:[%s5] sm:$0x1]
    %v157 = vperm.slane %v155, 0
    %vm159 = vcmask 261120
    %v161 = vsel %vm159, %v150, 0
    %163 = vmatpush.msra.mxu0 0.0
    %164 = vmatpush.msra.mxu0 0.0
    %165 = vmatpush.msra.mxu0 0.0
    %166 = vmatpush.msra.mxu0 0.0
    %167 = vmatpush.msra.mxu0 0.0
    %168 = vmatpush.msra.mxu0 0.0
    %169 = vmatpush.msra.mxu0 0.0
    %170 = vmatpush.msra.mxu0 0.0
    %171 = vmatpush.msra.mxu0 0.0
    %172 = vmatpush.msra.mxu0 0.0
    %173 = vmatpush.msra.mxu0 0.0
    %174 = vmatpush.msra.mxu0 0.0
    %175 = vmatpush.msra.mxu0 %v154
    %176 = vmatpush.msra.mxu0 %v153
    %177 = vmatpush.msra.mxu0 %v152
    %178 = vmatpush.msra.mxu0 %v151
    %179 = vmatmul.f32.gmra.mxu0 %v161
    %v180 = vpop.f32.mrf.mxu0
    %v181 = vadd.f32 %v157, %v180
    %182 = vdwg.mxu0
    %v183 = vtanh.pop %v181
    %v184 = vld [vmem:[#allocation7] sm:$0xff]
    %v185 = vld [vmem:[#allocation7 + $0x8] sm:$0xff]
    %v186 = vld [vmem:[#allocation7 + $0x10] sm:$0xff]
    %v187 = vld [vmem:[#allocation7 + $0x18] sm:$0xff]
    %v189 = vsel %vm159, %v183, 0
    %191 = vmatpush.msra.mxu0 0.0
    %192 = vmatpush.msra.mxu0 0.0
    %193 = vmatpush.msra.mxu0 0.0
    %194 = vmatpush.msra.mxu0 0.0
    %195 = vmatpush.msra.mxu0 0.0
    %196 = vmatpush.msra.mxu0 0.0
    %197 = vmatpush.msra.mxu0 0.0
    %198 = vmatpush.msra.mxu0 0.0
    %199 = vmatpush.msra.mxu0 0.0
    %200 = vmatpush.msra.mxu0 0.0
    %201 = vmatpush.msra.mxu0 0.0
    %202 = vmatpush.msra.mxu0 0.0
    %203 = vmatpush.msra.mxu0 %v187
    %204 = vmatpush.msra.mxu0 %v186
    %205 = vmatpush.msra.mxu0 %v185
    %206 = vmatpush.msra.mxu0 %v184
    %207 = vmatmul.f32.gmra.mxu0 %v189
    %v208 = vpop.f32.mrf.mxu0
    %v209 = vadd.f32 0.0, %v208
    %210 = vdwg.mxu0
    %v212 = vrot.slane %v209, 1
    %v213 = vperm.slane %v209, 0
    %v214 = vperm.slane %v212, 0
    %v217 = vmul.f32 %v148, %v213
    %v218 = vmul.f32 %v149, %v214
    %v219 = vld [vmem:[%s7] sm:$0xff]
    %v220 = vld [vmem:[%s7 + $0x8] sm:$0xff]
    %v221 = vld [vmem:[%s7 + $0x10] sm:$0xff]
    %v222 = vld [vmem:[%s7 + $0x18] sm:$0xff]
    %v223 = vld [vmem:[%s7 + $0x20] sm:$0xff]
    %v224 = vld [vmem:[%s7 + $0x28] sm:$0xff]
    %v225 = vld [vmem:[%s7 + $0x30] sm:$0xff]
    %v226 = vld [vmem:[%s7 + $0x38] sm:$0xff]
    %v227 = vld [vmem:[%s7 + $0x40] sm:$0xff]
    %v228 = vld [vmem:[%s7 + $0x48] sm:$0xff]
    %v229 = vld [vmem:[%s7 + $0x50] sm:$0xff]
    %v230 = vld [vmem:[%s7 + $0x58] sm:$0xff]
    %v231 = vld [vmem:[%s7 + $0x60] sm:$0xff]
    %v232 = vld [vmem:[%s7 + $0x68] sm:$0xff]
    %v233 = vld [vmem:[%s7 + $0x70] sm:$0xff]
    %v234 = vld [vmem:[%s7 + $0x78] sm:$0xff]
    %237 = vst [vmem:[#allocation1] ss:$4 sm:$0xff] %v217
    %s238 = scalar_lea.vmem [#allocation1], 1
    %239 = vst [vmem:[%s238] ss:$4 sm:$0xff] %v218
    %v240 = vld.sshfl [vmem:[#allocation1] sm:$0xff pattern:$0x73625140]
    %242 = vmatpush.msra.mxu0 %v234
    %243 = vmatpush.msra.mxu0 %v233
    %244 = vmatpush.msra.mxu0 %v232
    %245 = vmatpush.msra.mxu0 %v231
    %246 = vmatpush.msra.mxu0 %v230
    %247 = vmatpush.msra.mxu0 %v229
    %248 = vmatpush.msra.mxu0 %v228
    %249 = vmatpush.msra.mxu0 %v227
    %250 = vmatpush.msra.mxu0 %v226
    %251 = vmatpush.msra.mxu0 %v225
    %252 = vmatpush.msra.mxu0 %v224
    %253 = vmatpush.msra.mxu0 %v223
    %254 = vmatpush.msra.mxu0 %v222
    %255 = vmatpush.msra.mxu0 %v221
    %256 = vmatpush.msra.mxu0 %v220
    %257 = vmatpush.msra.mxu0 %v219
    %258 = vmatmul.f32.gmra.mxu0 %v240
    %v259 = vpop.f32.mrf.mxu0
    %v260 = vadd.f32 0.0, %v259
    %261 = vdwg.mxu0
    %v263 = vrot.slane %v260, 2
    %vm265 = vcmask 25600
    %v266 = vsel %vm265, %v260, -inf
    %267 = vmax.xlane.f32.xlu0 %v266
    %v268 = vpop.xlane.xlu0 %267
    %v269 = vsel %vm265, %v263, -inf
    %270 = vmax.xlane.f32.xlu0 %v269
    %v271 = vpop.xlane.xlu0 %270
    %vm272 = vcmask 1041408
    %v273 = vsel %vm272, %v268, -inf
    %v274 = vrot.slane %v273, 4
    %v275 = vmax.f32 %v273, %v274
    %v276 = vrot.slane %v275, 2
    %v277 = vmax.f32 %v275, %v276
    %v278 = vrot.slane %v277, 1
    %v279 = vmax.f32 %v277, %v278
    %v280 = vsel %vm272, %v271, -inf
    %v281 = vrot.slane %v280, 4
    %v282 = vmax.f32 %v280, %v281
    %v283 = vrot.slane %v282, 2
    %v284 = vmax.f32 %v282, %v283
    %v285 = vrot.slane %v284, 1
    %v286 = vmax.f32 %v284, %v285
    %v287 = vsub.f32 %v260, %v279
    %v288 = vsub.f32 %v263, %v286
    %v289 = vmul.f32 %v287, 1.442695
    %v290 = vpow.pop %v289
    %v291 = vmul.f32 %v288, 1.442695
    %v292 = vpow.pop %v291
    %v293 = vsel %vm265, %v290, 0.0
    %294 = vadd.xlane.f32.xlu0 %v293
    %v295 = vpop.xlane.xlu0 %294
    %v296 = vsel %vm265, %v292, 0.0
    %297 = vadd.xlane.f32.xlu0 %v296
    %v298 = vpop.xlane.xlu0 %297
    %v299 = vsel %vm272, %v295, 0.0
    %v300 = vrot.slane %v299, 4
    %v301 = vadd.f32 %v299, %v300
    %v302 = vrot.slane %v301, 2
    %v303 = vadd.f32 %v301, %v302
    %v304 = vrot.slane %v303, 1
    %v305 = vadd.f32 %v303, %v304
    %v306 = vsel %vm272, %v298, 0.0
    %v307 = vrot.slane %v306, 4
    %v308 = vadd.f32 %v306, %v307
    %v309 = vrot.slane %v308, 2
    %v310 = vadd.f32 %v308, %v309
    %v311 = vrot.slane %v310, 1
    %v312 = vadd.f32 %v310, %v311
    %v313 = vrcp.pop %v305
    %v314 = vmul.f32 %v305, %v313
    %v315 = vsub.f32 1.0, %v314
    %v316 = vmul.f32 %v313, %v315
    %v317 = vadd.f32 %v313, %v316
    %vm318 = vweird.f32 %v305
    %vm319 = vweird.f32 %v313
    %vm320 = vmor %vm318, %vm319
    %v321 = vsel %vm320, %v313, %v317
    %v322 = vand.u32 2147483647, %v305
    %vm323 = vcmp.eq.f32.partialorder %v322, 8.507059e+37
    %v324 = vand.u32 %v305, 2147483648
    %v325 = vor.u32 1.1754944e-38, %v324
    %v326 = vsel %vm323, %v325, %v321
    %v327 = vmul.f32 %v290, %v326
    %v328 = vrcp.pop %v312
    %v329 = vmul.f32 %v312, %v328
    %v330 = vsub.f32 1.0, %v329
    %v331 = vmul.f32 %v328, %v330
    %v332 = vadd.f32 %v328, %v331
    %vm333 = vweird.f32 %v312
    %vm334 = vweird.f32 %v328
    %vm335 = vmor %vm333, %vm334
    %v336 = vsel %vm335, %v328, %v332
    %v337 = vand.u32 2147483647, %v312
    %vm338 = vcmp.eq.f32.partialorder %v337, 8.507059e+37
    %v339 = vand.u32 %v312, 2147483648
    %v340 = vor.u32 1.1754944e-38, %v339
    %v341 = vsel %vm338, %v340, %v336
    %v342 = vmul.f32 %v292, %v341
    %v343 = vld [vmem:[#allocation8] sm:$0xf]
    %346 = vst [vmem:[#allocation1] ss:$4 sm:$0xff] %v327
    %s347 = scalar_lea.vmem [#allocation1], 1
    %348 = vst [vmem:[%s347] ss:$4 sm:$0xff] %v342
    %v349 = vld.sshfl [vmem:[#allocation1] sm:$0xff pattern:$0x73625140]
    %vm350 = vcmask 31744
    %v351 = vsel %vm350, %v349, 0
    %vm353 = vcmask 1043456
    %v355 = vsel %vm353, %v343, 0
    %357 = vmatpush.msra.mxu0 0.0
    %358 = vmatpush.msra.mxu0 0.0
    %359 = vmatpush.msra.mxu0 0.0
    %360 = vmatpush.msra.mxu0 0.0
    %361 = vmatpush.msra.mxu0 0.0
    %362 = vmatpush.msra.mxu0 0.0
    %363 = vmatpush.msra.mxu0 0.0
    %364 = vmatpush.msra.mxu0 0.0
    %365 = vmatpush.msra.mxu0 0.0
    %366 = vmatpush.msra.mxu0 0.0
    %367 = vmatpush.msra.mxu0 0.0
    %368 = vmatpush.msra.mxu0 0.0
    %369 = vmatpush.msra.mxu0 0.0
    %370 = vmatpush.msra.mxu0 0.0
    %371 = vmatpush.msra.mxu0 0.0
    %372 = vmatpush.msra.mxu0 %v355
    %373 = vmatmul.f32.gmra.mxu0 %v351
    %v374 = vpop.f32.mrf.mxu0
    %v375 = vadd.f32 0.0, %v374
    %376 = vdwg.mxu0
    %v378 = vrot.slane %v375, 2
    %v380 = vmul.f32 %v375, %v92
    %v381 = vmul.f32 %v378, %v93
    %v382 = vsel %vm272, %v380, 0.0
    %v383 = vrot.slane %v382, 4
    %v384 = vadd.f32 %v382, %v383
    %v385 = vrot.slane %v384, 2
    %v386 = vadd.f32 %v384, %v385
    %v387 = vrot.slane %v386, 1
    %v388 = vadd.f32 %v386, %v387
    %v389 = vsel %vm272, %v381, 0.0
    %v390 = vrot.slane %v389, 4
    %v391 = vadd.f32 %v389, %v390
    %v392 = vrot.slane %v391, 2
    %v393 = vadd.f32 %v391, %v392
    %v394 = vrot.slane %v393, 1
    %v395 = vadd.f32 %v393, %v394
    %vm398 = vcmask 1041409
    %v399 = vsel %vm398, %v395, %v388
    %401 = vst [vmem:[#allocation10] sm:$0x3] %v399
    // Predicated region
    $region54: #{tpu_custom_call.1} parent=1 // pred_check
      _
    $region55: #{tpu_custom_call.1} parent=1 // pred_check_branch
      %403 = sbr.rel (0) target = $region57
    $region56: #{tpu_custom_call.1} parent=1 // pred_region
      %405 = vsyncadd [#allocation4], 0
      %s407 = sshll.u32 [#allocation10], 4
      %s408 = int_to_ptr.vmem [resolvable:$true] %s407
      %s409 = sshll.u32 %s9, 4
      %s410 = int_to_ptr.hbm [resolvable:$true] %s409
      %412 = dma.vmem_to_hbm [thread:$0]  %s408, 32, %s410, [#allocation4]
    $region57: #{tpu_custom_call.1} parent=1 // pred_fallthru
      _
    // Predicated region
    $region58: #{tpu_custom_call.1} parent=1 // pred_check
      _
    $region59: #{tpu_custom_call.1} parent=1 // pred_check_branch
      %414 = sbr.rel (0) target = $region61
    $region60: #{tpu_custom_call.1} parent=1 // pred_region
      %416 = dma.done [#allocation4], 32
    $region61: #{tpu_custom_call.1} parent=1 // pred_fallthru
      _
    %417 = vsyncpa [#allocation3], 1
    %418 = vsyncpa [#allocation6], 1
    %419 = vsyncpa [#allocation9], 1
    %420 = vsyncpa [#allocation4], 1

</llo_original>
